<compile_context>
chip_gen: v5e
topology: v5e:2x2
jax: 0.10.0
libtpu: 0.0.40
codegen_flags: <defaults>
</compile_context>

<pallas_src>
import jax
import jax.numpy as jnp
from jax import lax
from jax.experimental import pallas as pl
from jax.experimental.pallas import tpu as pltpu


H1 = 128   # hidden 1
H2 = 64    # hidden 2 (PyTorch width)
H2P = 128  # hidden 2 padded to a full lane tile


def _round_up(n, m):
    return -(-n // m) * m


def _burn_predictor_kernel(x_ref, w1_ref, b1_ref, w2_ref, b2_ref, w3_ref, b3_ref, o_ref):
    # ---- Layer 1: Linear(input_size, 128) + LeakyReLU(0.1) ----
    # (BN1 folded into w2/b2; Dropout is identity in eval mode.)
    x = x_ref[...]                                                        # (TILE_B, IN) bf16
    h = jnp.dot(x, w1_ref[...], preferred_element_type=jnp.float32) + b1_ref[...]
    h = jnp.where(h > 0, h, 0.1 * h)

    # ---- Layer 2: Linear(128, 64 -> padded 128) + LeakyReLU(0.1) ----
    # (BN2 folded into w3/b3; padded columns are exactly 0 and stay 0 through LeakyReLU.)
    h = jnp.dot(h.astype(jnp.bfloat16), w2_ref[...],
                preferred_element_type=jnp.float32) + b2_ref[...]
    h = jnp.where(h > 0, h, 0.1 * h)

    # ---- Layer 3: Linear(64, 1) + Sigmoid ----
    # Single trans_b matmul: (1, H2P) @ (TILE_B, H2P)^T -> (1, TILE_B).  The output is
    # produced natively lane-dense; no XLU lane reduction or relayout is needed.
    logits = lax.dot_general(
        w3_ref[...], h.astype(jnp.bfloat16),
        dimension_numbers=(((1,), (1,)), ((), ())),
        preferred_element_type=jnp.float32,
    ) + b3_ref[...]                                                       # (1, TILE_B)
    o_ref[...] = jax.nn.sigmoid(logits)


def fold_params(params, *, mxu_dtype=jnp.bfloat16):
    """Fold BN scale/shift into the following Linear, pad hidden-2 64->128, row-ify w3.

    Matmul operands (w1, w2p, w3row) are stored in bf16 for the fast MXU path; biases
    stay f32 (they are added onto the f32 accumulators).
    """
    (w1, b1, s1, t1, w2, b2, s2, t2, w3, b3) = params

    # BN1 folded into Linear2:  (h*s1 + t1) @ w2 + b2 == h @ (s1^T * w2) + (t1 @ w2 + b2)
    w2f = w2 * s1.reshape(-1, 1)          # (128, 64)
    b2f = b2 + t1 @ w2                    # (1, 64)
    # BN2 folded into Linear3
    w3f = w3 * s2.reshape(-1, 1)          # (64, 1)
    b3f = b3 + t2 @ w3                    # (1, 1)

    # Pad hidden-2 to a full 128-lane tile (zero columns / zero w3 entries -> exact no-op).
    w2p = jnp.zeros((w2.shape[0], H2P), jnp.float32).at[:, :H2].set(w2f)
    b2p = jnp.zeros((1, H2P), jnp.float32).at[:, :H2].set(b2f)
    w3row = jnp.zeros((1, H2P), jnp.float32).at[:, :H2].set(w3f.T)

    return (w1.astype(mxu_dtype), b1.astype(jnp.float32),
            w2p.astype(mxu_dtype), b2p.astype(jnp.float32),
            w3row.astype(mxu_dtype), b3f.astype(jnp.float32))


def burn_predictor_forward(x, params, *, tile_b=4096):
    """x: (B, input_size) float32/bfloat16.  Returns (B,) float32 (matches .squeeze())."""
    B, input_size = x.shape
    w1, b1, w2p, b2p, w3row, b3 = fold_params(params)

    # bf16 x: halves the per-row HBM read (essentially the entire kernel HBM traffic)
    # and feeds the fast MXU path.  Cast in the wrapper so the HBM->VMEM DMA carries bf16.
    if x.dtype != jnp.bfloat16:
        x = x.astype(jnp.bfloat16)

    # Tile selection:
    #  * default 4096 rows (~6 MB/step working set) amortizes the ~0.35 us grid-step
    #    overhead and stays well under v5e's 16 MiB scoped-VMEM default.
    #  * keep >= 2 grid steps when the batch allows it so the "parallel" axis actually
    #    shards across v7x's two TensorCores.
    #  * never allocate a tile larger than the (8-aligned) batch.
    if B >= 256:
        tile_b = min(tile_b, _round_up(-(-B // 2), 128))
    tile_b = max(8, min(tile_b, _round_up(B, 8)))

    num_tiles = pl.cdiv(B, tile_b)
    out_cols = num_tiles * tile_b   # only the tiny output row is tile-aligned; x is NOT padded

    const = lambda a: pl.BlockSpec(a.shape, lambda i: (0, 0))  # weights resident across grid

    out = pl.pallas_call(
        _burn_predictor_kernel,
        out_shape=jax.ShapeDtypeStruct((1, out_cols), jnp.float32),
        grid=(num_tiles,),
        in_specs=[
            pl.BlockSpec((tile_b, input_size), lambda i: (i, 0)),   # x: batch-tiled (bf16)
            const(w1), const(b1),
            const(w2p), const(b2p),
            const(w3row), const(b3),
        ],
        out_specs=pl.BlockSpec((1, tile_b), lambda i: (0, i)),      # lane-dense output row
        compiler_params=pltpu.CompilerParams(
            dimension_semantics=("parallel",),                      # megacore on v7x
            vmem_limit_bytes=32 * 1024 * 1024,                      # headroom over v5e default
        ),
    )(x, w1, b1, w2p, b2p, w3row, b3)

    return out[0, :B]  # == .squeeze(); discards any boundary-block garbage lanes


def make_params(input_size, key):
    """Deterministic synthetic parameters with the shapes implied by BurnPredictor.__init__."""
    eps = 1e-5
    ks = jax.random.split(key, 14)

    def lin(kw, kb, fan_in, fan_out):
        # Stored as (in, out) — transposed vs. PyTorch's (out, in).
        bound = 1.0 / jnp.sqrt(fan_in)
        w = jax.random.uniform(kw, (fan_in, fan_out), jnp.float32, -bound, bound)
        b = jax.random.uniform(kb, (1, fan_out), jnp.float32, -bound, bound)
        return w, b

    w1, b1 = lin(ks[0], ks[1], input_size, H1)
    w2, b2 = lin(ks[2], ks[3], H1, H2)
    w3, b3 = lin(ks[4], ks[5], H2, 1)

    def bn(kg, kb_, km, kv, n):
        gamma = 1.0 + 0.1 * jax.random.normal(kg, (1, n), jnp.float32)
        beta = 0.1 * jax.random.normal(kb_, (1, n), jnp.float32)
        run_mean = 0.1 * jax.random.normal(km, (1, n), jnp.float32)
        run_var = 1.0 + 0.1 * jax.random.uniform(kv, (1, n), jnp.float32)
        scale = gamma / jnp.sqrt(run_var + eps)
        shift = beta - run_mean * scale
        return scale, shift

    s1, t1 = bn(ks[6], ks[7], ks[8], ks[9], H1)
    s2, t2 = bn(ks[10], ks[11], ks[12], ks[13], H2)

    return (w1, b1, s1, t1, w2, b2, s2, t2, w3, b3)


def reference_forward(x, params):
    """Pure-JAX f32 eval-mode reference (unfolded BN) for correctness checking."""
    (w1, b1, s1, t1, w2, b2, s2, t2, w3, b3) = params
    h = x @ w1 + b1
    h = jnp.where(h > 0, h, 0.1 * h)
    h = h * s1 + t1
    h = h @ w2 + b2
    h = jnp.where(h > 0, h, 0.1 * h)
    h = h * s2 + t2
    o = h @ w3 + b3
    return jax.nn.sigmoid(o)[:, 0]


if __name__ == "__main__":
    key = jax.random.PRNGKey(0)
    k_x, k_p = jax.random.split(key)

    batch = 8
    input_size = 32

    x = jax.random.normal(k_x, (batch, input_size), dtype=jnp.float32)
    params = make_params(input_size, k_p)

    y = burn_predictor_forward(x, params)
    y = jax.block_until_ready(y)

    assert y.shape == (batch,), y.shape
    assert bool(jnp.all((y >= 0.0) & (y <= 1.0)))

    # bf16 MXU operands vs. f32 reference: relaxed tolerance (per review).
    y_ref = reference_forward(x, params)
    assert bool(jnp.allclose(y, y_ref, atol=2e-2, rtol=2e-2)), (y, y_ref)

    print("KERNEL_OK")
</pallas_src>

<mosaic_0001>
module attributes {stable_mosaic.version = 11 : i64} {
  func.func @_burn_predictor_kernel(%arg0: i32, %arg1: memref<8x32xbf16, #tpu.memory_space<vmem>>, %arg2: memref<32x128xbf16, #tpu.memory_space<vmem>>, %arg3: memref<1x128xf32, #tpu.memory_space<vmem>>, %arg4: memref<128x128xbf16, #tpu.memory_space<vmem>>, %arg5: memref<1x128xf32, #tpu.memory_space<vmem>>, %arg6: memref<1x128xbf16, #tpu.memory_space<vmem>>, %arg7: memref<1x1xf32, #tpu.memory_space<vmem>>, %arg8: memref<1x8xf32, #tpu.memory_space<vmem>>) attributes {dimension_semantics = [#tpu.dimension_semantics<parallel>], iteration_bounds = array<i64: 1>, scalar_prefetch = 0 : i64, scratch_operands = 0 : i64, tpu.core_type = #tpu.core_type<tc>, window_params = [{transform_indices = @transform_0, window_bounds = array<i64: 8, 32>}, {pipeline_mode = #tpu.pipeline_mode<synchronous>, transform_indices = @transform_1, window_bounds = array<i64: 32, 128>}, {pipeline_mode = #tpu.pipeline_mode<synchronous>, transform_indices = @transform_2, window_bounds = array<i64: 1, 128>}, {pipeline_mode = #tpu.pipeline_mode<synchronous>, transform_indices = @transform_3, window_bounds = array<i64: 128, 128>}, {pipeline_mode = #tpu.pipeline_mode<synchronous>, transform_indices = @transform_4, window_bounds = array<i64: 1, 128>}, {pipeline_mode = #tpu.pipeline_mode<synchronous>, transform_indices = @transform_5, window_bounds = array<i64: 1, 128>}, {pipeline_mode = #tpu.pipeline_mode<synchronous>, transform_indices = @transform_6, window_bounds = array<i64: 1, 1>}, {transform_indices = @transform_7, window_bounds = array<i64: 1, 8>}]} {
    %c0 = arith.constant 0 : index
    %c0_0 = arith.constant 0 : index
    %0 = vector.load %arg1[%c0, %c0_0] : memref<8x32xbf16, #tpu.memory_space<vmem>>, vector<8x32xbf16>
    %c0_1 = arith.constant 0 : index
    %c0_2 = arith.constant 0 : index
    %1 = vector.load %arg2[%c0_1, %c0_2] : memref<32x128xbf16, #tpu.memory_space<vmem>>, vector<32x128xbf16>
    %cst = arith.constant dense<0.000000e+00> : vector<8x128xf32>
    %2 = tpu.matmul %0, %1, %cst {dimension_numbers = #tpu.dot_dimension_numbers<[1], [0], [0], [1], [0, 0, 1, 1], [], []>} : vector<8x32xbf16>, vector<32x128xbf16>, vector<8x128xf32> -> vector<8x128xf32>
    %c0_3 = arith.constant 0 : index
    %c0_4 = arith.constant 0 : index
    %3 = vector.load %arg3[%c0_3, %c0_4] : memref<1x128xf32, #tpu.memory_space<vmem>>, vector<1x128xf32>
    %4 = vector.broadcast %3 : vector<1x128xf32> to vector<8x128xf32>
    %5 = arith.addf %2, %4 : vector<8x128xf32>
    %cst_5 = arith.constant 0.000000e+00 : f32
    %6 = vector.broadcast %cst_5 : f32 to vector<8x128xf32>
    %7 = arith.cmpf ogt, %5, %6 : vector<8x128xf32>
    %cst_6 = arith.constant 1.000000e-01 : f32
    %8 = vector.broadcast %cst_6 : f32 to vector<8x128xf32>
    %9 = arith.mulf %8, %5 : vector<8x128xf32>
    %10 = arith.select %7, %5, %9 : vector<8x128xi1>, vector<8x128xf32>
    %11 = arith.truncf %10 : vector<8x128xf32> to vector<8x128xbf16>
    %c0_7 = arith.constant 0 : index
    %c0_8 = arith.constant 0 : index
    %12 = vector.load %arg4[%c0_7, %c0_8] : memref<128x128xbf16, #tpu.memory_space<vmem>>, vector<128x128xbf16>
    %cst_9 = arith.constant dense<0.000000e+00> : vector<8x128xf32>
    %13 = tpu.matmul %11, %12, %cst_9 {dimension_numbers = #tpu.dot_dimension_numbers<[1], [0], [0], [1], [0, 0, 1, 1], [], []>} : vector<8x128xbf16>, vector<128x128xbf16>, vector<8x128xf32> -> vector<8x128xf32>
    %c0_10 = arith.constant 0 : index
    %c0_11 = arith.constant 0 : index
    %14 = vector.load %arg5[%c0_10, %c0_11] : memref<1x128xf32, #tpu.memory_space<vmem>>, vector<1x128xf32>
    %15 = vector.broadcast %14 : vector<1x128xf32> to vector<8x128xf32>
    %16 = arith.addf %13, %15 : vector<8x128xf32>
    %cst_12 = arith.constant 0.000000e+00 : f32
    %17 = vector.broadcast %cst_12 : f32 to vector<8x128xf32>
    %18 = arith.cmpf ogt, %16, %17 : vector<8x128xf32>
    %cst_13 = arith.constant 1.000000e-01 : f32
    %19 = vector.broadcast %cst_13 : f32 to vector<8x128xf32>
    %20 = arith.mulf %19, %16 : vector<8x128xf32>
    %21 = arith.select %18, %16, %20 : vector<8x128xi1>, vector<8x128xf32>
    %c0_14 = arith.constant 0 : index
    %c0_15 = arith.constant 0 : index
    %22 = vector.load %arg6[%c0_14, %c0_15] : memref<1x128xbf16, #tpu.memory_space<vmem>>, vector<1x128xbf16>
    %23 = arith.truncf %21 : vector<8x128xf32> to vector<8x128xbf16>
    %cst_16 = arith.constant dense<0.000000e+00> : vector<1x8xf32>
    %24 = tpu.matmul %22, %23, %cst_16 {dimension_numbers = #tpu.dot_dimension_numbers<[1], [1], [0], [0], [0, 0, 1, 0], [], []>} : vector<1x128xbf16>, vector<8x128xbf16>, vector<1x8xf32> -> vector<1x8xf32>
    %c0_17 = arith.constant 0 : index
    %c0_18 = arith.constant 0 : index
    %25 = vector.load %arg7[%c0_17, %c0_18] : memref<1x1xf32, #tpu.memory_space<vmem>>, vector<1x1xf32>
    %26 = vector.broadcast %25 : vector<1x1xf32> to vector<1x8xf32>
    %27 = arith.addf %24, %26 : vector<1x8xf32>
    %28 = arith.negf %27 : vector<1x8xf32>
    %29 = math.exp %28 : vector<1x8xf32>
    %cst_19 = arith.constant 1.000000e+00 : f32
    %30 = vector.broadcast %cst_19 : f32 to vector<1x8xf32>
    %31 = arith.addf %30, %29 : vector<1x8xf32>
    %32 = arith.divf %30, %31 : vector<1x8xf32>
    %c0_20 = arith.constant 0 : index
    %c0_21 = arith.constant 0 : index
    %33 = vector.load %arg8[%c0_20, %c0_21] : memref<1x8xf32, #tpu.memory_space<vmem>>, vector<1x8xf32>
    tpu.vector_store %arg8[%c0_20, %c0_21], %32 {strides = array<i32>} : memref<1x8xf32, #tpu.memory_space<vmem>>, vector<1x8xf32>,
    return
  }
  func.func @transform_0(%arg0: i32) -> (i32, i32) {
    %c0_i32 = arith.constant 0 : i32
    %c0_i32_0 = arith.constant 0 : i32
    return %arg0, %c0_i32 : i32, i32
  }
  func.func @transform_1(%arg0: i32) -> (i32, i32) {
    %c0_i32 = arith.constant 0 : i32
    %c0_i32_0 = arith.constant 0 : i32
    %c0_i32_1 = arith.constant 0 : i32
    return %c0_i32, %c0_i32_0 : i32, i32
  }
  func.func @transform_2(%arg0: i32) -> (i32, i32) {
    %c0_i32 = arith.constant 0 : i32
    %c0_i32_0 = arith.constant 0 : i32
    %c0_i32_1 = arith.constant 0 : i32
    return %c0_i32, %c0_i32_0 : i32, i32
  }
  func.func @transform_3(%arg0: i32) -> (i32, i32) {
    %c0_i32 = arith.constant 0 : i32
    %c0_i32_0 = arith.constant 0 : i32
    %c0_i32_1 = arith.constant 0 : i32
    return %c0_i32, %c0_i32_0 : i32, i32
  }
  func.func @transform_4(%arg0: i32) -> (i32, i32) {
    %c0_i32 = arith.constant 0 : i32
    %c0_i32_0 = arith.constant 0 : i32
    %c0_i32_1 = arith.constant 0 : i32
    return %c0_i32, %c0_i32_0 : i32, i32
  }
  func.func @transform_5(%arg0: i32) -> (i32, i32) {
    %c0_i32 = arith.constant 0 : i32
    %c0_i32_0 = arith.constant 0 : i32
    %c0_i32_1 = arith.constant 0 : i32
    return %c0_i32, %c0_i32_0 : i32, i32
  }
  func.func @transform_6(%arg0: i32) -> (i32, i32) {
    %c0_i32 = arith.constant 0 : i32
    %c0_i32_0 = arith.constant 0 : i32
    %c0_i32_1 = arith.constant 0 : i32
    return %c0_i32, %c0_i32_0 : i32, i32
  }
  func.func @transform_7(%arg0: i32) -> (i32, i32) {
    %c0_i32 = arith.constant 0 : i32
    %c0_i32_0 = arith.constant 0 : i32
    return %c0_i32, %arg0 : i32, i32
  }
}

</mosaic_0001>

<llo_original>
// kernel: tpu_custom_call.1
$region0: #{tpu_custom_call.1}
  #allocation0 [shape = 'u32[]', space=smem, size = 0x4, offset = 0x4, fixed_abs, tag = 'smem constant byte address 0x4 - core index']
  #allocation1 [shape = 'u32[72,128]{1,0:T(1,128)}', space=vmem, size = 0x9000, scoped, tag = 'internal scratch']
  #allocation2 [shape = 'f32[1,1]{1,0:T(1,128)S(1)}', space=vmem, size = 0x200, scoped, tag = 'scoped memory for tpu_custom_call.1']
  %s0 = inlined_call_operand.hbm [shape: bf16[8,32], index: 0, kind: input, shape index: {}]
  %s1 = inlined_call_operand.hbm [shape: bf16[32,128], index: 1, kind: input, shape index: {}]
  %s2 = inlined_call_operand.vmem [shape: f32[1,128], index: 2, kind: input, shape index: {}]
  %s3 = inlined_call_operand.hbm [shape: bf16[128,128], index: 3, kind: input, shape index: {}]
  %s4 = inlined_call_operand.vmem [shape: f32[1,128], index: 4, kind: input, shape index: {}]
  %s5 = inlined_call_operand.vmem [shape: bf16[1,128], index: 5, kind: input, shape index: {}]
  %s6 = inlined_call_operand.<no memory space> [shape: f32[1,1], index: 6, kind: input, shape index: {}]
  %s7 = inlined_call_operand.hbm [shape: f32[1,8], index: 7, kind: output, shape index: {}]
  %s8 = sld [smem:[#allocation0]]
  $region50: #{tpu_custom_call.1} parent=0
    _
  %s10 = ssub.s32 1, %s8
  %s11 = scalar_select 0, %s10, %s8
  %v12 = vstv %s6
  %13 = vst [vmem:[#allocation2] sm:$0x1] %v12
  $region1: #{tpu_custom_call.1} parent=0
    #allocation3 [shape = 'u8[2048]{0}', space=vmem, size = 0x800, scoped, tag = 'input window, operand 0, single buffered']
    #allocation4 [shape = 's32[1]{0}', space=sflag, size = 0x4, scoped, tag = 'scoped memory for tpu_custom_call.1']
    #allocation5 [shape = 's32[1]{0}', space=sflag, size = 0x4, scoped, tag = 'scoped memory for tpu_custom_call.1']
    #allocation6 [shape = 'u8[8192]{0}', space=vmem, size = 0x2000, scoped, tag = 'input window, operand 1, single buffered']
    #allocation7 [shape = 's32[1]{0}', space=sflag, size = 0x4, scoped, tag = 'scoped memory for tpu_custom_call.1']
    #allocation8 [shape = 'u8[32768]{0}', space=vmem, size = 0x8000, scoped, tag = 'input window, operand 3, single buffered']
    #allocation9 [shape = 'u8[512]{0}', space=vmem, size = 0x400, scoped, tag = 'output window, operand 0, single buffered']
    %14 = vsyncpa [#allocation4], 0
    %15 = vsyncpa [#allocation7], 0
    %16 = vsyncpa [#allocation5], 0
    // Predicated region
    $region2: #{tpu_custom_call.1} parent=1 // pred_check
      _
    $region3: #{tpu_custom_call.1} parent=1 // pred_check_branch
      %18 = sbr.rel (0) target = $region5
    $region4: #{tpu_custom_call.1} parent=1 // pred_region
      %20 = vsyncadd [#allocation4], 0
      %s22 = sshll.u32 %s0, 4
      %s23 = int_to_ptr.hbm [resolvable:$true] %s22
      %s24 = sshll.u32 [#allocation3], 4
      %s25 = int_to_ptr.vmem [resolvable:$true] %s24
      %27 = dma.hbm_to_vmem [thread:$0]  %s23, 64, %s25, [#allocation4]
    $region5: #{tpu_custom_call.1} parent=1 // pred_fallthru
      _
    // Predicated region
    $region6: #{tpu_custom_call.1} parent=1 // pred_check
      _
    $region7: #{tpu_custom_call.1} parent=1 // pred_check_branch
      %29 = sbr.rel (0) target = $region9
    $region8: #{tpu_custom_call.1} parent=1 // pred_region
      %31 = vsyncadd [#allocation7], 0
      %s32 = sshll.u32 %s1, 4
      %s33 = int_to_ptr.hbm [resolvable:$true] %s32
      %s34 = sshll.u32 [#allocation6], 4
      %s35 = int_to_ptr.vmem [resolvable:$true] %s34
      %40 = dma.hbm_to_vmem [thread:$0]  %s33, 256, %s35, [#allocation7], 64, 64, 4
    $region9: #{tpu_custom_call.1} parent=1 // pred_fallthru
      _
    // Predicated region
    $region10: #{tpu_custom_call.1} parent=1 // pred_check
      _
    $region11: #{tpu_custom_call.1} parent=1 // pred_check_branch
      %42 = sbr.rel (0) target = $region13
    $region12: #{tpu_custom_call.1} parent=1 // pred_region
      _
    $region13: #{tpu_custom_call.1} parent=1 // pred_fallthru
      _
    // Predicated region
    $region14: #{tpu_custom_call.1} parent=1 // pred_check
      _
    $region15: #{tpu_custom_call.1} parent=1 // pred_check_branch
      %44 = sbr.rel (0) target = $region17
    $region16: #{tpu_custom_call.1} parent=1 // pred_region
      %46 = vsyncadd [#allocation7], 0
      %s47 = sshll.u32 %s3, 4
      %s48 = int_to_ptr.hbm [resolvable:$true] %s47
      %s49 = sshll.u32 [#allocation8], 4
      %s50 = int_to_ptr.vmem [resolvable:$true] %s49
      %55 = dma.hbm_to_vmem [thread:$0]  %s48, 1024, %s50, [#allocation7], 64, 64, 4
    $region17: #{tpu_custom_call.1} parent=1 // pred_fallthru
      _
    // Predicated region
    $region18: #{tpu_custom_call.1} parent=1 // pred_check
      _
    $region19: #{tpu_custom_call.1} parent=1 // pred_check_branch
      %57 = sbr.rel (0) target = $region21
    $region20: #{tpu_custom_call.1} parent=1 // pred_region
      _
    $region21: #{tpu_custom_call.1} parent=1 // pred_fallthru
      _
    // Predicated region
    $region22: #{tpu_custom_call.1} parent=1 // pred_check
      _
    $region23: #{tpu_custom_call.1} parent=1 // pred_check_branch
      %59 = sbr.rel (0) target = $region25
    $region24: #{tpu_custom_call.1} parent=1 // pred_region
      _
    $region25: #{tpu_custom_call.1} parent=1 // pred_fallthru
      _
    // Predicated region
    $region26: #{tpu_custom_call.1} parent=1 // pred_check
      _
    $region27: #{tpu_custom_call.1} parent=1 // pred_check_branch
      %61 = sbr.rel (0) target = $region29
    $region28: #{tpu_custom_call.1} parent=1 // pred_region
      _
    $region29: #{tpu_custom_call.1} parent=1 // pred_fallthru
      _
    // Predicated region
    $region30: #{tpu_custom_call.1} parent=1 // pred_check
      _
    $region31: #{tpu_custom_call.1} parent=1 // pred_check_branch
      %63 = sbr.rel (0) target = $region33
    $region32: #{tpu_custom_call.1} parent=1 // pred_region
      %65 = dma.done [#allocation4], 64
    $region33: #{tpu_custom_call.1} parent=1 // pred_fallthru
      _
    // Predicated region
    $region34: #{tpu_custom_call.1} parent=1 // pred_check
      _
    $region35: #{tpu_custom_call.1} parent=1 // pred_check_branch
      %67 = sbr.rel (0) target = $region37
    $region36: #{tpu_custom_call.1} parent=1 // pred_region
      %69 = dma.done [#allocation7], 256
    $region37: #{tpu_custom_call.1} parent=1 // pred_fallthru
      _
    // Predicated region
    $region38: #{tpu_custom_call.1} parent=1 // pred_check
      _
    $region39: #{tpu_custom_call.1} parent=1 // pred_check_branch
      %71 = sbr.rel (0) target = $region41
    $region40: #{tpu_custom_call.1} parent=1 // pred_region
      %73 = dma.done [#allocation7], 1024
    $region41: #{tpu_custom_call.1} parent=1 // pred_fallthru
      _
    %v75 = vld [vmem:[#allocation3] sm:$0xf]
    %v76 = vld [vmem:[#allocation6] sm:$0xf]
    %v77 = vld [vmem:[#allocation6 + $0x4] sm:$0xf]
    %v78 = vld [vmem:[#allocation6 + $0x8] sm:$0xf]
    %v79 = vld [vmem:[#allocation6 + $0xc] sm:$0xf]
    %v80 = vld [vmem:[%s2] sm:$0x1]
    %v82 = vperm.slane %v80, 0
    %v88 = vunpack.c.l.b16 %v76
    %v89 = vunpack.c.l.b16 %v77
    %v90 = vunpack.c.l.b16 %v78
    %v91 = vunpack.c.l.b16 %v79
    %v92 = vpack.c.b16 %v89, %v88
    %v93 = vpack.c.b16 %v91, %v90
    %vm96 = vcmask 261120
    %v98 = vsel %vm96, %v75, 0
    %100 = vmatpush.bf16.msra.mxu0 0
    %101 = vmatpush.bf16.msra.mxu0 0
    %102 = vmatpush.bf16.msra.mxu0 0
    %103 = vmatpush.bf16.msra.mxu0 0
    %104 = vmatpush.bf16.msra.mxu0 0
    %105 = vmatpush.bf16.msra.mxu0 0
    %106 = vmatpush.bf16.msra.mxu0 %v93
    %107 = vmatpush.bf16.msra.mxu0 %v92
    %108 = vmatmul.bf16.gmra.mxu0 %v98
    %v109 = vpop.f32.mrf.mxu0
    %v110 = vadd.f32 %v82, %v109
    %v111 = vpop.f32.mrf.mxu0
    %112 = vdwg.mxu0
    %vm113 = vcmp.gt.f32.partialorder %v110, 0.0
    %v114 = vmul.f32 %v110, 0.1
    %v115 = vsel %vm113, %v110, %v114
    %v116 = vpack.c.bf16 %v115, %v115
    %v117 = vld [vmem:[#allocation8] sm:$0xf]
    %v118 = vld [vmem:[#allocation8 + $0x4] sm:$0xf]
    %v119 = vld [vmem:[#allocation8 + $0x8] sm:$0xf]
    %v120 = vld [vmem:[#allocation8 + $0xc] sm:$0xf]
    %v121 = vld [vmem:[#allocation8 + $0x10] sm:$0xf]
    %v122 = vld [vmem:[#allocation8 + $0x14] sm:$0xf]
    %v123 = vld [vmem:[#allocation8 + $0x18] sm:$0xf]
    %v124 = vld [vmem:[#allocation8 + $0x1c] sm:$0xf]
    %v125 = vld [vmem:[#allocation8 + $0x20] sm:$0xf]
    %v126 = vld [vmem:[#allocation8 + $0x24] sm:$0xf]
    %v127 = vld [vmem:[#allocation8 + $0x28] sm:$0xf]
    %v128 = vld [vmem:[#allocation8 + $0x2c] sm:$0xf]
    %v129 = vld [vmem:[#allocation8 + $0x30] sm:$0xf]
    %v130 = vld [vmem:[#allocation8 + $0x34] sm:$0xf]
    %v131 = vld [vmem:[#allocation8 + $0x38] sm:$0xf]
    %v132 = vld [vmem:[#allocation8 + $0x3c] sm:$0xf]
    %v133 = vld [vmem:[%s4] sm:$0x1]
    %v135 = vperm.slane %v133, 0
    %v153 = vunpack.c.l.b16 %v117
    %v154 = vunpack.c.l.b16 %v118
    %v155 = vunpack.c.l.b16 %v119
    %v156 = vunpack.c.l.b16 %v120
    %v157 = vunpack.c.l.b16 %v121
    %v158 = vunpack.c.l.b16 %v122
    %v159 = vunpack.c.l.b16 %v123
    %v160 = vunpack.c.l.b16 %v124
    %v161 = vunpack.c.l.b16 %v125
    %v162 = vunpack.c.l.b16 %v126
    %v163 = vunpack.c.l.b16 %v127
    %v164 = vunpack.c.l.b16 %v128
    %v165 = vunpack.c.l.b16 %v129
    %v166 = vunpack.c.l.b16 %v130
    %v167 = vunpack.c.l.b16 %v131
    %v168 = vunpack.c.l.b16 %v132
    %v169 = vpack.c.b16 %v154, %v153
    %v170 = vpack.c.b16 %v156, %v155
    %v171 = vpack.c.b16 %v158, %v157
    %v172 = vpack.c.b16 %v160, %v159
    %v173 = vpack.c.b16 %v162, %v161
    %v174 = vpack.c.b16 %v164, %v163
    %v175 = vpack.c.b16 %v166, %v165
    %v176 = vpack.c.b16 %v168, %v167
    %185 = vmatpush.bf16.msra.mxu0 %v176
    %186 = vmatpush.bf16.msra.mxu0 %v175
    %187 = vmatpush.bf16.msra.mxu0 %v174
    %188 = vmatpush.bf16.msra.mxu0 %v173
    %189 = vmatpush.bf16.msra.mxu0 %v172
    %190 = vmatpush.bf16.msra.mxu0 %v171
    %191 = vmatpush.bf16.msra.mxu0 %v170
    %192 = vmatpush.bf16.msra.mxu0 %v169
    %193 = vmatmul.bf16.gmra.mxu0 %v116
    %v194 = vpop.f32.mrf.mxu0
    %v195 = vadd.f32 %v135, %v194
    %v196 = vpop.f32.mrf.mxu0
    %197 = vdwg.mxu0
    %vm198 = vcmp.gt.f32.partialorder %v195, 0.0
    %v199 = vmul.f32 %v195, 0.1
    %v200 = vsel %vm198, %v195, %v199
    %v201 = vld [vmem:[%s5] sm:$0x1]
    %v202 = vpack.c.bf16 %v200, %v200
    %v203 = vld [vmem:[#allocation2] sm:$0x1]
    %205 = vset.pattern.permute.xlu0 0
    %206 = vperm.xlu0 %205, %v203
    %v207 = vpop.permute.xlu0 %206
    %v209 = vperm.slane %v207, 0
    %210 = vmatpush.bf16.xpose.msra.mxu0 0
    %211 = vmatpush.bf16.xpose.msra.mxu0 0
    %212 = vmatpush.bf16.xpose.msra.mxu0 0
    %213 = vmatpush.bf16.xpose.msra.mxu0 0
    %214 = vmatpush.bf16.xpose.msra.mxu0 0
    %215 = vmatpush.bf16.xpose.msra.mxu0 0
    %216 = vmatpush.bf16.xpose.msra.mxu0 0
    %217 = vmatpush.bf16.xpose.msra.mxu0 %v202
    %218 = vmatmul.bf16.gmra.mxu0 %v201
    %v219 = vpop.f32.mrf.mxu0
    %v220 = vadd.f32 %v209, %v219
    %v221 = vpop.f32.mrf.mxu0
    %222 = vdwg.mxu0
    %v223 = vxor.u32 %v220, 2147483648
    %v224 = vmul.f32 %v223, 1.442695
    %v225 = vpow.pop %v224
    %v226 = vadd.f32 %v225, 1.0
    %v227 = vrcp.pop %v226
    %v228 = vmul.f32 %v226, %v227
    %v229 = vsub.f32 1.0, %v228
    %v230 = vmul.f32 %v227, %v229
    %v231 = vadd.f32 %v227, %v230
    %vm232 = vweird.f32 %v226
    %vm233 = vweird.f32 %v227
    %vm234 = vmor %vm232, %vm233
    %v235 = vsel %vm234, %v227, %v231
    %v236 = vand.u32 2147483647, %v226
    %vm237 = vcmp.eq.f32.partialorder %v236, 8.507059e+37
    %v238 = vand.u32 %v226, 2147483648
    %v239 = vor.u32 1.1754944e-38, %v238
    %v240 = vsel %vm237, %v239, %v235
    %v241 = vmul.f32 1.0, %v240
    %vm242 = vcmask 57344
    %243 = vst.msk [vmem:[#allocation9] sm:$0x1] %vm242, %v241
    // Predicated region
    $region42: #{tpu_custom_call.1} parent=1 // pred_check
      _
    $region43: #{tpu_custom_call.1} parent=1 // pred_check_branch
      %245 = sbr.rel (0) target = $region45
    $region44: #{tpu_custom_call.1} parent=1 // pred_region
      %247 = vsyncadd [#allocation5], 0
      %s249 = sshll.u32 [#allocation9], 4
      %s250 = int_to_ptr.vmem [resolvable:$true] %s249
      %s251 = sshll.u32 %s7, 4
      %s252 = int_to_ptr.hbm [resolvable:$true] %s251
      %254 = dma.vmem_to_hbm [thread:$0]  %s250, 16, %s252, [#allocation5]
    $region45: #{tpu_custom_call.1} parent=1 // pred_fallthru
      _
    // Predicated region
    $region46: #{tpu_custom_call.1} parent=1 // pred_check
      _
    $region47: #{tpu_custom_call.1} parent=1 // pred_check_branch
      %256 = sbr.rel (0) target = $region49
    $region48: #{tpu_custom_call.1} parent=1 // pred_region
      %258 = dma.done [#allocation5], 16
    $region49: #{tpu_custom_call.1} parent=1 // pred_fallthru
      _
    %259 = vsyncpa [#allocation4], 1
    %260 = vsyncpa [#allocation7], 1
    %261 = vsyncpa [#allocation5], 1

</llo_original>
